<compile_context>
chip_gen: v6e
topology: v6e:2x2x1
jax: 0.10.0
libtpu: 0.0.40
codegen_flags: <defaults>
</compile_context>

<pallas_src>
import jax
import jax.numpy as jnp
from jax import lax
from jax.experimental import pallas as pl
from jax.experimental.pallas import tpu as pltpu

BLOCK_SIZE = 256          # causal-mask buffer size in the reference module
ACT_BIT = 8               # QuantAct activation bits
SOFTMAX_OUT_BIT = 8       # IntSoftmax output bits
DROPOUT_P = 0.2           # identity in eval mode

_QMAX = 2.0 ** (ACT_BIT - 1) - 1.0        # 127
_INV_WEI_SF = 2.0 ** SOFTMAX_OUT_BIT      # 256
_WEI_SF = 1.0 / _INV_WEI_SF               # IntSoftmax output scaling factor
_NEG_INF = -1e30                          # additive causal-mask bias


def _make_head_kernel(block_b, transpose_out):
    """Kernel factory: block_b batches per grid step, optional lane-dense (C,T) output."""

    def kernel(scales_ref, q_ref, k_ref, v_ref, bias_ref, out_ref):
        # scales_ref: (3,) f32 in SMEM -> per-tensor QuantAct scales for q, k, v.
        q_s = scales_ref[0]
        k_s = scales_ref[1]
        v_s = scales_ref[2]
        C = q_ref.shape[-1]

        # Hoist all scalar factors out of the per-batch loop.
        inv_q = 1.0 / q_s
        inv_k = 1.0 / k_s
        inv_v = 1.0 / v_s
        comb = q_s * k_s * (C ** -0.5)          # q/k dequant folded with 1/sqrt(C)
        out_scale = _WEI_SF * _WEI_SF * v_s     # softmax dequant * v dequant * trailing wei_sf
        bias = bias_ref[...]                    # (T, T) additive causal bias (VMEM resident)

        def one_batch(b, carry):
            def to_int_grid(ref, inv_s):
                # Symmetric fake-quant integer-grid values in f32 (v5e has no bf16 VPU);
                # integers in [-128, 127] are exact in bf16 -> lossless MXU bf16 path.
                x = ref[b].astype(jnp.float32) * inv_s
                return jnp.clip(jnp.round(x), -_QMAX - 1.0, _QMAX).astype(jnp.bfloat16)

            q_int = to_int_grid(q_ref, inv_q)
            k_int = to_int_grid(k_ref, inv_k)
            v_int = to_int_grid(v_ref, inv_v)

            # q @ k^T on the integer grid (bf16 operands, f32 accumulation on the MXU).
            s_raw = lax.dot_general(q_int, k_int, (((1,), (1,)), ((), ())),
                                    preferred_element_type=jnp.float32)
            wei = s_raw * comb + bias

            # IntSoftmax(8): softmax whose output is quantized in steps of 1/256.
            m = jnp.max(wei, axis=-1, keepdims=True)
            e = jnp.exp(wei - m)
            denom = jnp.sum(e, axis=-1, keepdims=True)
            p = e / denom                              # exact division (bit-faithful floor)
            p_int = jnp.floor(p * _INV_WEI_SF).astype(jnp.bfloat16)   # integers in [0, 256]

            # dropout(0.2): identity in eval mode.

            if transpose_out:
                # Lane-dense store path: (C, T) with T a multiple of 128.
                # out^T[c, tq] = sum_k v_int[k, c] * p_int[tq, k]
                o_t = lax.dot_general(v_int, p_int, (((0,), (1,)), ((), ())),
                                      preferred_element_type=jnp.float32)
                out_ref[b] = (o_t * out_scale).astype(out_ref.dtype)
            else:
                o = jnp.dot(p_int, v_int, preferred_element_type=jnp.float32)
                out_ref[b] = (o * out_scale).astype(out_ref.dtype)
            return carry

        lax.fori_loop(0, block_b, one_batch, None, unroll=True)

    return kernel


def _pick_block_b(B, T, C, itemsize):
    """Batches per grid step: amortize per-step overhead, keep VMEM bounded, and keep
    the grid >= 2 steps (when B >= 2) so 'parallel' can split across v7x's 2 TCs."""
    per_batch_bytes = 4 * T * C * itemsize               # q, k, v, out tiles
    cap = max(1, (1 << 20) // max(per_batch_bytes, 1))   # ~1 MiB of block data / step
    cap = min(cap, 64)                                    # v7x: 64 MiB physical VMEM headroom
    if B >= 2:
        cap = min(cap, max(1, B // 2))                    # keep >= 2 grid steps
    block_b = 1
    for d in range(1, min(cap, B) + 1):                   # largest divisor -> no partial blocks
        if B % d == 0:
            block_b = d
    return block_b


def _causal_bias(T):
    row = lax.broadcasted_iota(jnp.int32, (T, T), 0)
    col = lax.broadcasted_iota(jnp.int32, (T, T), 1)
    return jnp.where(col <= row, 0.0, _NEG_INF).astype(jnp.float32)


def head_forward(q, k, v, q_scaling_factor=None, k_scaling_factor=None,
                 v_scaling_factor=None, act_scales=None):
    """Pallas implementation of Head.forward.

    `act_scales` (shape (3,), f32) are the per-tensor QuantAct scales (max|x|/127) for
    q, k, v; pass them from the producer to avoid an extra full HBM pass over the
    inputs.  If None, they are derived here (same semantics as the reference).
    The incoming q/k/v_scaling_factor are accepted for signature parity.
    Returns (out * wei_scaling_factor, wei_scaling_factor), like the PyTorch module.
    """
    B, T, C = q.shape
    assert T <= BLOCK_SIZE, "sequence length exceeds the module's block_size"
    assert k.shape == (B, T, C) and v.shape == (B, T, C)

    if act_scales is None:
        def _act_scale(x):
            return jnp.maximum(jnp.max(jnp.abs(x)).astype(jnp.float32) / _QMAX, 1e-8)
        act_scales = jnp.stack([_act_scale(q), _act_scale(k), _act_scale(v)])
    act_scales = jnp.asarray(act_scales, jnp.float32).reshape(3)

    bias = _causal_bias(T)

    block_b = _pick_block_b(B, T, C, jnp.dtype(q.dtype).itemsize)
    grid = (B // block_b,)

    # Lane-dense store path only when T is a multiple of 128 (otherwise the transposed
    # store would itself be lane-sparse).
    transpose_out = (T % 128 == 0)

    out_dtype = q.dtype                      # bf16 in -> bf16 out (halves write traffic)
    if transpose_out:
        out_shape = jax.ShapeDtypeStruct((B, C, T), out_dtype)
        out_spec = pl.BlockSpec((block_b, C, T), lambda i, sc: (i, 0, 0))
    else:
        out_shape = jax.ShapeDtypeStruct((B, T, C), out_dtype)
        out_spec = pl.BlockSpec((block_b, T, C), lambda i, sc: (i, 0, 0))

    grid_spec = pltpu.PrefetchScalarGridSpec(
        num_scalar_prefetch=1,                         # act scales -> SMEM
        grid=grid,
        in_specs=[
            pl.BlockSpec((block_b, T, C), lambda i, sc: (i, 0, 0)),
            pl.BlockSpec((block_b, T, C), lambda i, sc: (i, 0, 0)),
            pl.BlockSpec((block_b, T, C), lambda i, sc: (i, 0, 0)),
            pl.BlockSpec((T, T), lambda i, sc: (0, 0)),   # causal bias, VMEM resident
        ],
        out_specs=out_spec,
    )

    out = pl.pallas_call(
        _make_head_kernel(block_b, transpose_out),
        out_shape=out_shape,
        grid_spec=grid_spec,
        compiler_params=pltpu.CompilerParams(
            # Batch axis is independent -> shard across TensorCores on v7x.
            dimension_semantics=("parallel",),
            # Per-step blocks are <= ~1 MiB x double-buffering; 32 MiB is safe on
            # v5e/v6e (128 MiB physical) and well inside v7x's 64 MiB.
            vmem_limit_bytes=32 * 1024 * 1024,
        ),
    )(act_scales, q, k, v, bias)

    if transpose_out:
        out = jnp.swapaxes(out, 1, 2)        # back to (B, T, C)

    wei_scaling_factor = jnp.asarray(_WEI_SF, jnp.float32)
    return out, wei_scaling_factor


def _head_ref(q, k, v):
    """Plain-JAX reference of the same math (for a sanity check)."""
    def fq(x):
        s = jnp.maximum(jnp.max(jnp.abs(x)) / _QMAX, 1e-8)
        return jnp.clip(jnp.round(x / s), -_QMAX - 1.0, _QMAX) * s

    qf, kf, vf = fq(q), fq(k), fq(v)
    B, T, C = q.shape
    wei = jnp.einsum("btc,bsc->bts", qf, kf) * (C ** -0.5)
    causal = jnp.tril(jnp.ones((T, T), bool))[None]
    wei = jnp.where(causal, wei, -jnp.inf)
    m = jnp.max(wei, axis=-1, keepdims=True)
    e = jnp.exp(wei - m)
    p = e / jnp.sum(e, axis=-1, keepdims=True)
    p_q = jnp.floor(p / _WEI_SF) * _WEI_SF
    out = jnp.einsum("bts,bsc->btc", p_q, vf)
    return out * _WEI_SF, jnp.asarray(_WEI_SF, jnp.float32)


if __name__ == "__main__":
    key = jax.random.PRNGKey(0)

    def run_case(B, T, C):
        kq, kk, kv = jax.random.split(jax.random.fold_in(key, T), 3)
        q = jax.random.normal(kq, (B, T, C), jnp.float32)
        k = jax.random.normal(kk, (B, T, C), jnp.float32)
        v = jax.random.normal(kv, (B, T, C), jnp.float32)
        sf = jnp.asarray(1.0, jnp.float32)

        out, wei_sf = head_forward(q, k, v, sf, sf, sf)
        out = jax.block_until_ready(out)

        ref_out, ref_sf = _head_ref(q, k, v)
        assert out.shape == (B, T, C)
        assert float(wei_sf) == float(ref_sf)
        err = float(jnp.max(jnp.abs(out - ref_out)))
        assert err < 1e-3, f"kernel/reference mismatch (B={B}, T={T}, C={C}): {err}"

    # Small shape (T < 128 -> standard (T, C) store path, block_b = 1, grid = 2).
    run_case(B=2, T=8, C=32)
    # Batched grid step (block_b = 4) + lane-dense transposed-output path (T = 128).
    run_case(B=8, T=128, C=32)

    print("KERNEL_OK")
</pallas_src>

<mosaic_0001>
module attributes {stable_mosaic.version = 11 : i64} {
  func.func @kernel(%arg0: i32, %arg1: memref<3xf32, #tpu.memory_space<smem>>, %arg2: memref<1x8x32xf32, #tpu.memory_space<vmem>>, %arg3: memref<1x8x32xf32, #tpu.memory_space<vmem>>, %arg4: memref<1x8x32xf32, #tpu.memory_space<vmem>>, %arg5: memref<8x8xf32, #tpu.memory_space<vmem>>, %arg6: memref<1x8x32xf32, #tpu.memory_space<vmem>>) attributes {dimension_semantics = [#tpu.dimension_semantics<parallel>], iteration_bounds = array<i64: 2>, scalar_prefetch = 1 : i64, scratch_operands = 0 : i64, tpu.core_type = #tpu.core_type<tc>, window_params = [{transform_indices = @transform_0, window_bounds = array<i64: 1, 8, 32>}, {transform_indices = @transform_1, window_bounds = array<i64: 1, 8, 32>}, {transform_indices = @transform_2, window_bounds = array<i64: 1, 8, 32>}, {pipeline_mode = #tpu.pipeline_mode<synchronous>, transform_indices = @transform_3, window_bounds = array<i64: 8, 8>}, {transform_indices = @transform_4, window_bounds = array<i64: 1, 8, 32>}]} {
    %c0 = arith.constant 0 : index
    %0 = memref.load %arg1[%c0] : memref<3xf32, #tpu.memory_space<smem>>
    %c1 = arith.constant 1 : index
    %1 = memref.load %arg1[%c1] : memref<3xf32, #tpu.memory_space<smem>>
    %c2 = arith.constant 2 : index
    %2 = memref.load %arg1[%c2] : memref<3xf32, #tpu.memory_space<smem>>
    %cst = arith.constant 1.000000e+00 : f32
    %3 = arith.divf %cst, %0 : f32
    %cst_0 = arith.constant 1.000000e+00 : f32
    %4 = arith.divf %cst_0, %1 : f32
    %cst_1 = arith.constant 1.000000e+00 : f32
    %5 = arith.divf %cst_1, %2 : f32
    %6 = arith.mulf %0, %1 : f32
    %cst_2 = arith.constant 0.176776692 : f32
    %7 = arith.mulf %6, %cst_2 : f32
    %cst_3 = arith.constant 1.52587891E-5 : f32
    %8 = arith.mulf %cst_3, %2 : f32
    %c0_4 = arith.constant 0 : index
    %c0_5 = arith.constant 0 : index
    %9 = vector.load %arg5[%c0_4, %c0_5] : memref<8x8xf32, #tpu.memory_space<vmem>>, vector<8x8xf32>
    %c0_i32 = arith.constant 0 : i32
    %10 = arith.index_cast %c0_i32 : i32 to index
    %c0_6 = arith.constant 0 : index
    %c0_7 = arith.constant 0 : index
    %11 = vector.load %arg2[%10, %c0_6, %c0_7] : memref<1x8x32xf32, #tpu.memory_space<vmem>>, vector<1x8x32xf32>
    %12 = vector.shape_cast %11 : vector<1x8x32xf32> to vector<8x32xf32>
    %13 = vector.broadcast %3 : f32 to vector<8x32xf32>
    %14 = arith.mulf %12, %13 : vector<8x32xf32>
    %15 = math.roundeven %14 : vector<8x32xf32>
    %cst_8 = arith.constant -1.280000e+02 : f32
    %cst_9 = arith.constant 1.270000e+02 : f32
    %16 = vector.broadcast %cst_8 : f32 to vector<8x32xf32>
    %17 = arith.maximumf %16, %15 : vector<8x32xf32>
    %18 = vector.broadcast %cst_9 : f32 to vector<8x32xf32>
    %19 = arith.minimumf %18, %17 : vector<8x32xf32>
    %20 = arith.truncf %19 : vector<8x32xf32> to vector<8x32xbf16>
    %21 = arith.index_cast %c0_i32 : i32 to index
    %c0_10 = arith.constant 0 : index
    %c0_11 = arith.constant 0 : index
    %22 = vector.load %arg3[%21, %c0_10, %c0_11] : memref<1x8x32xf32, #tpu.memory_space<vmem>>, vector<1x8x32xf32>
    %23 = vector.shape_cast %22 : vector<1x8x32xf32> to vector<8x32xf32>
    %24 = vector.broadcast %4 : f32 to vector<8x32xf32>
    %25 = arith.mulf %23, %24 : vector<8x32xf32>
    %26 = math.roundeven %25 : vector<8x32xf32>
    %cst_12 = arith.constant -1.280000e+02 : f32
    %cst_13 = arith.constant 1.270000e+02 : f32
    %27 = vector.broadcast %cst_12 : f32 to vector<8x32xf32>
    %28 = arith.maximumf %27, %26 : vector<8x32xf32>
    %29 = vector.broadcast %cst_13 : f32 to vector<8x32xf32>
    %30 = arith.minimumf %29, %28 : vector<8x32xf32>
    %31 = arith.truncf %30 : vector<8x32xf32> to vector<8x32xbf16>
    %32 = arith.index_cast %c0_i32 : i32 to index
    %c0_14 = arith.constant 0 : index
    %c0_15 = arith.constant 0 : index
    %33 = vector.load %arg4[%32, %c0_14, %c0_15] : memref<1x8x32xf32, #tpu.memory_space<vmem>>, vector<1x8x32xf32>
    %34 = vector.shape_cast %33 : vector<1x8x32xf32> to vector<8x32xf32>
    %35 = vector.broadcast %5 : f32 to vector<8x32xf32>
    %36 = arith.mulf %34, %35 : vector<8x32xf32>
    %37 = math.roundeven %36 : vector<8x32xf32>
    %cst_16 = arith.constant -1.280000e+02 : f32
    %cst_17 = arith.constant 1.270000e+02 : f32
    %38 = vector.broadcast %cst_16 : f32 to vector<8x32xf32>
    %39 = arith.maximumf %38, %37 : vector<8x32xf32>
    %40 = vector.broadcast %cst_17 : f32 to vector<8x32xf32>
    %41 = arith.minimumf %40, %39 : vector<8x32xf32>
    %42 = arith.truncf %41 : vector<8x32xf32> to vector<8x32xbf16>
    %cst_18 = arith.constant dense<0.000000e+00> : vector<8x8xf32>
    %43 = tpu.matmul %20, %31, %cst_18 {dimension_numbers = #tpu.dot_dimension_numbers<[1], [1], [0], [0], [0, 0, 1, 0], [], []>} : vector<8x32xbf16>, vector<8x32xbf16>, vector<8x8xf32> -> vector<8x8xf32>
    %44 = vector.broadcast %7 : f32 to vector<8x8xf32>
    %45 = arith.mulf %43, %44 : vector<8x8xf32>
    %46 = arith.addf %45, %9 : vector<8x8xf32>
    %cst_19 = arith.constant dense<0xFF800000> : vector<8xf32>
    %47 = vector.multi_reduction <maximumf>, %46, %cst_19 [1] : vector<8x8xf32> to vector<8xf32>
    %48 = vector.shape_cast %47 : vector<8xf32> to vector<8x1xf32>
    %49 = vector.broadcast %48 : vector<8x1xf32> to vector<8x8xf32>
    %50 = arith.subf %46, %49 : vector<8x8xf32>
    %51 = math.exp %50 : vector<8x8xf32>
    %cst_20 = arith.constant dense<0.000000e+00> : vector<8xf32>
    %52 = vector.multi_reduction <add>, %51, %cst_20 [1] : vector<8x8xf32> to vector<8xf32>
    %53 = vector.shape_cast %52 : vector<8xf32> to vector<8x1xf32>
    %54 = vector.broadcast %53 : vector<8x1xf32> to vector<8x8xf32>
    %55 = arith.divf %51, %54 : vector<8x8xf32>
    %cst_21 = arith.constant 2.560000e+02 : f32
    %56 = vector.broadcast %cst_21 : f32 to vector<8x8xf32>
    %57 = arith.mulf %55, %56 : vector<8x8xf32>
    %58 = math.floor %57 : vector<8x8xf32>
    %59 = arith.truncf %58 : vector<8x8xf32> to vector<8x8xbf16>
    %cst_22 = arith.constant dense<0.000000e+00> : vector<8x32xf32>
    %60 = tpu.matmul %59, %42, %cst_22 {dimension_numbers = #tpu.dot_dimension_numbers<[1], [0], [0], [1], [0, 0, 1, 1], [], []>} : vector<8x8xbf16>, vector<8x32xbf16>, vector<8x32xf32> -> vector<8x32xf32>
    %61 = vector.broadcast %8 : f32 to vector<8x32xf32>
    %62 = arith.mulf %60, %61 : vector<8x32xf32>
    %63 = arith.index_cast %c0_i32 : i32 to index
    %c0_23 = arith.constant 0 : index
    %c0_24 = arith.constant 0 : index
    %64 = vector.load %arg6[%63, %c0_23, %c0_24] : memref<1x8x32xf32, #tpu.memory_space<vmem>>, vector<1x8x32xf32>
    %65 = vector.shape_cast %64 : vector<1x8x32xf32> to vector<8x32xf32>
    %66 = vector.shape_cast %62 : vector<8x32xf32> to vector<1x8x32xf32>
    tpu.vector_store %arg6[%63, %c0_23, %c0_24], %66 {strides = array<i32>} : memref<1x8x32xf32, #tpu.memory_space<vmem>>, vector<1x8x32xf32>,
    %c1_i32 = arith.constant 1 : i32
    return
  }
  func.func @transform_0(%arg0: i32, %arg1: memref<3xf32, #tpu.memory_space<smem>>) -> (i32, i32, i32) {
    %c0_i32 = arith.constant 0 : i32
    %c0_i32_0 = arith.constant 0 : i32
    %c0_i32_1 = arith.constant 0 : i32
    return %arg0, %c0_i32, %c0_i32_0 : i32, i32, i32
  }
  func.func @transform_1(%arg0: i32, %arg1: memref<3xf32, #tpu.memory_space<smem>>) -> (i32, i32, i32) {
    %c0_i32 = arith.constant 0 : i32
    %c0_i32_0 = arith.constant 0 : i32
    %c0_i32_1 = arith.constant 0 : i32
    return %arg0, %c0_i32, %c0_i32_0 : i32, i32, i32
  }
  func.func @transform_2(%arg0: i32, %arg1: memref<3xf32, #tpu.memory_space<smem>>) -> (i32, i32, i32) {
    %c0_i32 = arith.constant 0 : i32
    %c0_i32_0 = arith.constant 0 : i32
    %c0_i32_1 = arith.constant 0 : i32
    return %arg0, %c0_i32, %c0_i32_0 : i32, i32, i32
  }
  func.func @transform_3(%arg0: i32, %arg1: memref<3xf32, #tpu.memory_space<smem>>) -> (i32, i32) {
    %c0_i32 = arith.constant 0 : i32
    %c0_i32_0 = arith.constant 0 : i32
    %c0_i32_1 = arith.constant 0 : i32
    return %c0_i32, %c0_i32_0 : i32, i32
  }
  func.func @transform_4(%arg0: i32, %arg1: memref<3xf32, #tpu.memory_space<smem>>) -> (i32, i32, i32) {
    %c0_i32 = arith.constant 0 : i32
    %c0_i32_0 = arith.constant 0 : i32
    %c0_i32_1 = arith.constant 0 : i32
    return %arg0, %c0_i32, %c0_i32_0 : i32, i32, i32
  }
}

</mosaic_0001>

<llo_original>
// kernel: tpu_custom_call.1
$region0: #{tpu_custom_call.1}
  #allocation0 [shape = 'u32[]', space=smem, size = 0x4, offset = 0x4, fixed_abs, tag = 'smem constant byte address 0x4 - core index']
  #allocation1 [shape = 'u32[144,128]{1,0:T(1,128)}', space=vmem, size = 0x12000, scoped, tag = 'internal scratch']
  #allocation2 [shape = 's32[1]{0}', space=sflag, size = 0x4, scoped, tag = 'scoped memory for tpu_custom_call.1']
  #allocation3 [shape = 'u8[512]{0}', space=smem, size = 0x200, scoped, tag = 'prefetched SMEM operand 0']
  %s0 = inlined_call_operand.hbm [shape: f32[3], index: 0, kind: input, shape index: {}]
  %s1 = inlined_call_operand.hbm [shape: f32[2,8,32], index: 1, kind: input, shape index: {}]
  %s2 = inlined_call_operand.hbm [shape: f32[2,8,32], index: 2, kind: input, shape index: {}]
  %s3 = inlined_call_operand.hbm [shape: f32[2,8,32], index: 3, kind: input, shape index: {}]
  %s4 = inlined_call_operand.hbm [shape: f32[8,8], index: 4, kind: input, shape index: {}]
  %s5 = inlined_call_operand.hbm [shape: f32[2,8,32], index: 5, kind: output, shape index: {}]
  %s6 = sld [smem:[#allocation0]]
  $region65: #{tpu_custom_call.1} parent=0
    _
  %s8 = ssub.s32 1, %s6
  %s9 = scalar_select 0, %s8, %s6
  %11 = dma.hbm_to_smem %s0, 16, [#allocation3], [#allocation2]
  %12 = dma.done [#allocation2], 16
  %13 = sfence
  $region1: #{tpu_custom_call.1} parent=0
    #allocation4 [shape = 'u8[8192]{0}', space=vmem, size = 0x2000, scoped, tag = 'input window, operand 1']
    #allocation5 [shape = 's32[2]{0}', space=sflag, size = 0x8, scoped, tag = 'scoped memory for tpu_custom_call.1']
    #allocation6 [shape = 's32[2]{0}', space=sflag, size = 0x8, scoped, tag = 'scoped memory for tpu_custom_call.1']
    #allocation7 [shape = 'u8[8192]{0}', space=vmem, size = 0x2000, scoped, tag = 'input window, operand 2']
    #allocation8 [shape = 's32[2]{0}', space=sflag, size = 0x8, scoped, tag = 'scoped memory for tpu_custom_call.1']
    #allocation9 [shape = 'u8[8192]{0}', space=vmem, size = 0x2000, scoped, tag = 'input window, operand 3']
    #allocation10 [shape = 'u8[4096]{0}', space=vmem, size = 0x1000, scoped, tag = 'input window, operand 4, single buffered']
    #allocation11 [shape = 's32[1]{0}', space=sflag, size = 0x4, scoped, tag = 'scoped memory for tpu_custom_call.1']
    #allocation12 [shape = 'u8[8192]{0}', space=vmem, size = 0x2000, scoped, tag = 'output window, operand 0']
    %14 = vsyncpa [#allocation5], 0
    %s15 = scalar_lea.sflag [#allocation5], 1
    %16 = vsyncpa %s15, 0
    %17 = vsyncpa [#allocation8], 0
    %s18 = scalar_lea.sflag [#allocation8], 1
    %19 = vsyncpa %s18, 0
    %20 = vsyncpa [#allocation11], 0
    %21 = vsyncpa [#allocation6], 0
    %s22 = scalar_lea.sflag [#allocation6], 1
    %23 = vsyncpa %s22, 0
    loop: start=0, step=1, limit=4
    $region2: #{tpu_custom_call.1} parent=1 // loop_pre_header
      _
    $region3: #{tpu_custom_call.1} parent=1 // loop_header
      %s25 = sphi 0, %s29
      %p26 = scmp.ge.s32.totalorder %s25, 4
      %s35 = sphi 0, %s37
      %s38 = sphi 0, %s35
      %s39 = sphi 0, %s38
      %s55 = sphi 0, %s39
      %s61 = sphi 0, %s63
      %s64 = sphi 0, %s61
      %s65 = sphi 0, %s64
      %s81 = sphi 0, %s65
      %s87 = sphi 0, %s89
      %s90 = sphi 0, %s87
      %s91 = sphi 0, %s90
      %s107 = sphi 0, %s91
      %s111 = sphi 0, %s111
      %s113 = sphi 0, %s111
      %s114 = sphi 0, %s113
      %s128 = sphi 0, %s114
      %s134 = sphi 0, %s136
      %s137 = sphi 0, %s134
      %s138 = sphi 0, %s137
      %s154 = sphi 0, %s138
    $region4: #{tpu_custom_call.1} parent=1 // loop_header_branch
      %28 = sbr.rel (%p26) target = $region8
    $region5: #{tpu_custom_call.1} parent=1 // loop_body
      %s30 = ssub.s32 %s25, 1
      %s31 = ssub.s32 %s25, 2
      %s32 = sadd.s32 %s25, 1
      %s33 = ssub.s32 %s25, %s32
      %p34 = scmp.eq.s32.totalorder %s33, 0
      %s36 = sadd.s32 %s35, 1
      %s37 = scalar_select %p34, %s35, %s36
      %p40 = pneg %p34
      %p41 = scmp.eq.s32.totalorder %s25, 1
      %p42 = por %p40, %p41
      %p43 = scmp.ne.s32.totalorder %s35, %s38
      %p44 = scmp.eq.s32.totalorder %s25, 0
      %p45 = por %p43, %p44
      %p46 = scmp.ne.s32.totalorder %s35, %s38
      %p47 = scmp.eq.s32.totalorder %s30, 1
      %p48 = por %p46, %p47
      %p49 = scmp.ne.s32.totalorder %s38, %s39
      %p50 = scmp.eq.s32.totalorder %s30, 0
      %p51 = por %p49, %p50
      %p52 = scmp.ne.s32.totalorder %s38, %s39
      %p53 = scmp.eq.s32.totalorder %s31, 1
      %p54 = por %p52, %p53
      %p56 = scmp.ne.s32.totalorder %s39, %s55
      %p57 = scmp.eq.s32.totalorder %s31, 0
      %p58 = por %p56, %p57
      %s59 = ssub.s32 %s25, %s32
      %p60 = scmp.eq.s32.totalorder %s59, 0
      %s62 = sadd.s32 %s61, 1
      %s63 = scalar_select %p60, %s61, %s62
      %p66 = pneg %p60
      %p67 = scmp.eq.s32.totalorder %s25, 1
      %p68 = por %p66, %p67
      %p69 = scmp.ne.s32.totalorder %s61, %s64
      %p70 = scmp.eq.s32.totalorder %s25, 0
      %p71 = por %p69, %p70
      %p72 = scmp.ne.s32.totalorder %s61, %s64
      %p73 = scmp.eq.s32.totalorder %s30, 1
      %p74 = por %p72, %p73
      %p75 = scmp.ne.s32.totalorder %s64, %s65
      %p76 = scmp.eq.s32.totalorder %s30, 0
      %p77 = por %p75, %p76
      %p78 = scmp.ne.s32.totalorder %s64, %s65
      %p79 = scmp.eq.s32.totalorder %s31, 1
      %p80 = por %p78, %p79
      %p82 = scmp.ne.s32.totalorder %s65, %s81
      %p83 = scmp.eq.s32.totalorder %s31, 0
      %p84 = por %p82, %p83
      %s85 = ssub.s32 %s25, %s32
      %p86 = scmp.eq.s32.totalorder %s85, 0
      %s88 = sadd.s32 %s87, 1
      %s89 = scalar_select %p86, %s87, %s88
      %p92 = pneg %p86
      %p93 = scmp.eq.s32.totalorder %s25, 1
      %p94 = por %p92, %p93
      %p95 = scmp.ne.s32.totalorder %s87, %s90
      %p96 = scmp.eq.s32.totalorder %s25, 0
      %p97 = por %p95, %p96
      %p98 = scmp.ne.s32.totalorder %s87, %s90
      %p99 = scmp.eq.s32.totalorder %s30, 1
      %p100 = por %p98, %p99
      %p101 = scmp.ne.s32.totalorder %s90, %s91
      %p102 = scmp.eq.s32.totalorder %s30, 0
      %p103 = por %p101, %p102
      %p104 = scmp.ne.s32.totalorder %s90, %s91
      %p105 = scmp.eq.s32.totalorder %s31, 1
      %p106 = por %p104, %p105
      %p108 = scmp.ne.s32.totalorder %s91, %s107
      %p109 = scmp.eq.s32.totalorder %s31, 0
      %p110 = por %p108, %p109
      %s112 = sadd.s32 %s111, 1
      %p115 = scmp.eq.s32.totalorder %s25, 1
      %p116 = scmp.ne.s32.totalorder %s111, %s113
      %p117 = scmp.eq.s32.totalorder %s25, 0
      %p118 = por %p116, %p117
      %p119 = scmp.ne.s32.totalorder %s111, %s113
      %p120 = scmp.eq.s32.totalorder %s30, 1
      %p121 = por %p119, %p120
      %p122 = scmp.ne.s32.totalorder %s113, %s114
      %p123 = scmp.eq.s32.totalorder %s30, 0
      %p124 = por %p122, %p123
      %p125 = scmp.ne.s32.totalorder %s113, %s114
      %p126 = scmp.eq.s32.totalorder %s31, 1
      %p127 = por %p125, %p126
      %p129 = scmp.ne.s32.totalorder %s114, %s128
      %p130 = scmp.eq.s32.totalorder %s31, 0
      %p131 = por %p129, %p130
      %s132 = ssub.s32 %s25, %s32
      %p133 = scmp.eq.s32.totalorder %s132, 0
      %s135 = sadd.s32 %s134, 1
      %s136 = scalar_select %p133, %s134, %s135
      %p139 = pneg %p133
      %p140 = scmp.eq.s32.totalorder %s25, 1
      %p141 = por %p139, %p140
      %p142 = scmp.ne.s32.totalorder %s134, %s137
      %p143 = scmp.eq.s32.totalorder %s25, 0
      %p144 = por %p142, %p143
      %p145 = scmp.ne.s32.totalorder %s134, %s137
      %p146 = scmp.eq.s32.totalorder %s30, 1
      %p147 = por %p145, %p146
      %p148 = scmp.ne.s32.totalorder %s137, %s138
      %p149 = scmp.eq.s32.totalorder %s30, 0
      %p150 = por %p148, %p149
      %p151 = scmp.ne.s32.totalorder %s137, %s138
      %p152 = scmp.eq.s32.totalorder %s31, 1
      %p153 = por %p151, %p152
      %p155 = scmp.ne.s32.totalorder %s138, %s154
      %p156 = scmp.eq.s32.totalorder %s31, 0
      %p157 = por %p155, %p156
      %p158 = scmp.le.s32.totalorder 1, %s25
      %p159 = scmp.lt.s32.totalorder %s25, 3
      %p160 = pnand %p158, %p159
      %p161 = pneg %p160
      // Predicated region
      $region9: #{tpu_custom_call.1} parent=5 // pred_check
        _
      $region10: #{tpu_custom_call.1} parent=5 // pred_check_branch
        %163 = sbr.rel (%p160) target = $region12
      $region11: #{tpu_custom_call.1} parent=5 // pred_region
        %s164 = ssub.s32 %s25, 1
        // Predicated region
        $region13: #{tpu_custom_call.1} parent=11 // pred_check
          %p165 = pneg %p124
        $region14: #{tpu_custom_call.1} parent=11 // pred_check_branch
          %167 = sbr.rel (%p165) target = $region16
        $region15: #{tpu_custom_call.1} parent=11 // pred_region
          %s169 = ssub.s32 128, 128
          %170 = vsyncadd [#allocation11], %s169
          %s172 = sshll.u32 [#allocation10], 4
          %s173 = int_to_ptr.vmem [resolvable:$true] %s172
          %175 = dma.hbm_to_vmem [thread:$0]  %s4, 128, %s173, [#allocation11]
        $region16: #{tpu_custom_call.1} parent=11 // pred_fallthru
          _
      $region12: #{tpu_custom_call.1} parent=5 // pred_fallthru
        _
      %p176 = scmp.lt.s32.totalorder %s25, 2
      // Predicated region
      $region17: #{tpu_custom_call.1} parent=5 // pred_check
        %p177 = pneg %p176
      $region18: #{tpu_custom_call.1} parent=5 // pred_check_branch
        %179 = sbr.rel (%p177) target = $region20
      $region19: #{tpu_custom_call.1} parent=5 // pred_region
        // Predicated region
        $region21: #{tpu_custom_call.1} parent=19 // pred_check
          %p180 = pneg %p45
        $region22: #{tpu_custom_call.1} parent=19 // pred_check_branch
          %182 = sbr.rel (%p180) target = $region24
        $region23: #{tpu_custom_call.1} parent=19 // pred_region
          %s183 = sand.u32 %s35, 1
          %s184 = scalar_lea.sflag [#allocation5], %s183
          %s185 = sand.u32 %s35, 1
          %s186 = smul.addr %s185, 8
          %s187 = scalar_lea.vmem [#allocation4], %s186
          %s189 = ssub.s32 128, 128
          %190 = vsyncadd %s184, %s189
          %s191 = smul.addr %s25, 128
          %s192 = scalar_lea.hbm %s1, %s191
          %s194 = sshll.u32 %s187, 4
          %s195 = int_to_ptr.vmem [resolvable:$true] %s194
          %197 = dma.hbm_to_vmem [thread:$0]  %s192, 128, %s195, %s184
        $region24: #{tpu_custom_call.1} parent=19 // pred_fallthru
          _
        // Predicated region
        $region25: #{tpu_custom_call.1} parent=19 // pred_check
          %p198 = pneg %p71
        $region26: #{tpu_custom_call.1} parent=19 // pred_check_branch
          %200 = sbr.rel (%p198) target = $region28
        $region27: #{tpu_custom_call.1} parent=19 // pred_region
          %s201 = sand.u32 %s25, 1
          %s202 = scalar_lea.sflag [#allocation8], %s201
          %s203 = sand.u32 %s61, 1
          %s204 = smul.addr %s203, 8
          %s205 = scalar_lea.vmem [#allocation7], %s204
          %s207 = ssub.s32 128, 128
          %208 = vsyncadd %s202, %s207
          %s209 = smul.addr %s25, 128
          %s210 = scalar_lea.hbm %s2, %s209
          %s212 = sshll.u32 %s205, 4
          %s213 = int_to_ptr.vmem [resolvable:$true] %s212
          %215 = dma.hbm_to_vmem [thread:$0]  %s210, 128, %s213, %s202
        $region28: #{tpu_custom_call.1} parent=19 // pred_fallthru
          _
        // Predicated region
        $region29: #{tpu_custom_call.1} parent=19 // pred_check
          %p216 = pneg %p97
        $region30: #{tpu_custom_call.1} parent=19 // pred_check_branch
          %218 = sbr.rel (%p216) target = $region32
        $region31: #{tpu_custom_call.1} parent=19 // pred_region
          %s219 = sand.u32 %s25, 1
          %s220 = scalar_lea.sflag [#allocation8], %s219
          %s221 = sand.u32 %s87, 1
          %s222 = smul.addr %s221, 8
          %s223 = scalar_lea.vmem [#allocation9], %s222
          %s225 = ssub.s32 128, 128
          %226 = vsyncadd %s220, %s225
          %s227 = smul.addr %s25, 128
          %s228 = scalar_lea.hbm %s3, %s227
          %s230 = sshll.u32 %s223, 4
          %s231 = int_to_ptr.vmem [resolvable:$true] %s230
          %233 = dma.hbm_to_vmem [thread:$0]  %s228, 128, %s231, %s220
        $region32: #{tpu_custom_call.1} parent=19 // pred_fallthru
          _
      $region20: #{tpu_custom_call.1} parent=5 // pred_fallthru
        _
      %p234 = scmp.le.s32.totalorder 1, %s25
      %p235 = scmp.lt.s32.totalorder %s25, 3
      %p236 = pnand %p234, %p235
      %p237 = pneg %p236
      // Predicated region
      $region33: #{tpu_custom_call.1} parent=5 // pred_check
        _
      $region34: #{tpu_custom_call.1} parent=5 // pred_check_branch
        %239 = sbr.rel (%p236) target = $region36
      $region35: #{tpu_custom_call.1} parent=5 // pred_region
        %s240 = ssub.s32 %s25, 1
        %s241 = sand.u32 %s38, 1
        %s242 = scalar_lea.sflag [#allocation5], %s241
        %s243 = sand.u32 %s38, 1
        %s244 = smul.addr %s243, 8
        %s245 = scalar_lea.vmem [#allocation4], %s244
        // Predicated region
        $region37: #{tpu_custom_call.1} parent=35 // pred_check
          %p246 = pneg %p51
        $region38: #{tpu_custom_call.1} parent=35 // pred_check_branch
          %248 = sbr.rel (%p246) target = $region40
        $region39: #{tpu_custom_call.1} parent=35 // pred_region
          %249 = dma.done %s242, 128
        $region40: #{tpu_custom_call.1} parent=35 // pred_fallthru
          _
        %s250 = sand.u32 %s30, 1
        %s251 = scalar_lea.sflag [#allocation8], %s250
        %s252 = sand.u32 %s64, 1
        %s253 = smul.addr %s252, 8
        %s254 = scalar_lea.vmem [#allocation7], %s253
        // Predicated region
        $region41: #{tpu_custom_call.1} parent=35 // pred_check
          %p255 = pneg %p77
        $region42: #{tpu_custom_call.1} parent=35 // pred_check_branch
          %257 = sbr.rel (%p255) target = $region44
        $region43: #{tpu_custom_call.1} parent=35 // pred_region
          %258 = dma.done %s251, 128
        $region44: #{tpu_custom_call.1} parent=35 // pred_fallthru
          _
        %s259 = sand.u32 %s30, 1
        %s260 = scalar_lea.sflag [#allocation8], %s259
        %s261 = sand.u32 %s90, 1
        %s262 = smul.addr %s261, 8
        %s263 = scalar_lea.vmem [#allocation9], %s262
        // Predicated region
        $region45: #{tpu_custom_call.1} parent=35 // pred_check
          %p264 = pneg %p103
        $region46: #{tpu_custom_call.1} parent=35 // pred_check_branch
          %266 = sbr.rel (%p264) target = $region48
        $region47: #{tpu_custom_call.1} parent=35 // pred_region
          %267 = dma.done %s260, 128
        $region48: #{tpu_custom_call.1} parent=35 // pred_fallthru
          _
        // Predicated region
        $region49: #{tpu_custom_call.1} parent=35 // pred_check
          %p268 = pneg %p124
        $region50: #{tpu_custom_call.1} parent=35 // pred_check_branch
          %270 = sbr.rel (%p268) target = $region52
        $region51: #{tpu_custom_call.1} parent=35 // pred_region
          %271 = dma.done [#allocation11], 128
        $region52: #{tpu_custom_call.1} parent=35 // pred_fallthru
          _
        %s272 = sand.u32 %s38, 1
        %s273 = scalar_lea.sflag [#allocation5], %s272
        %s274 = sand.u32 %s38, 1
        %s275 = smul.addr %s274, 8
        %s276 = scalar_lea.vmem [#allocation4], %s275
        %p277 = pneg %p51
        %p278 = pneg %p48
        %s279 = sand.u32 %s30, 1
        %s280 = scalar_lea.sflag [#allocation8], %s279
        %s281 = sand.u32 %s64, 1
        %s282 = smul.addr %s281, 8
        %s283 = scalar_lea.vmem [#allocation7], %s282
        %p284 = pneg %p77
        %p285 = pneg %p74
        %s286 = sand.u32 %s30, 1
        %s287 = scalar_lea.sflag [#allocation8], %s286
        %s288 = sand.u32 %s90, 1
        %s289 = smul.addr %s288, 8
        %s290 = scalar_lea.vmem [#allocation9], %s289
        %p291 = pneg %p103
        %p292 = pneg %p100
        %p293 = pneg %p124
        %p294 = pneg %p121
        %p295 = pneg %p150
        %p296 = pneg %p147
        %s297 = sand.u32 %s137, 1
        %s298 = scalar_lea.sflag [#allocation6], %s297
        %s299 = sand.u32 %s137, 1
        %s300 = smul.addr %s299, 8
        %s301 = scalar_lea.vmem [#allocation12], %s300
        %s303 = sld [smem:[#allocation3]]
        %s304 = sld [smem:[#allocation3 + $0x1]]
        %s305 = sld [smem:[#allocation3 + $0x2]]
        %v306 = vstv %s303
        %v307 = vrcp.pop %v306
        %s308 = vtos %v307
        %v309 = vstv %s304
        %v310 = vrcp.pop %v309
        %s311 = vtos %v310
        %v312 = vstv %s305
        %v313 = vrcp.pop %v312
        %s314 = vtos %v313
        %s315 = smul.f32 %s303, %s304
        %s316 = smul.f32 %s315, 0.17677669
        %s317 = smul.f32 %s305, 1.5258789e-05
        %v318 = vld [vmem:[#allocation10] sm:$0xff]
        %v319 = vld [vmem:[%s245] sm:$0xff]
        %v320 = vstv %s308
        %v321 = vmul.f32 %v319, %v320
        %v322 = vround.ne.pseudo %v321
        %v323 = vmax.f32 %v322, -128.0
        %v324 = vmin.f32 %v323, 127.0
        %v325 = vpack.c.bf16 %v324, %v324
        %v326 = vld [vmem:[%s254] sm:$0xff]
        %v327 = vstv %s311
        %v328 = vmul.f32 %v326, %v327
        %v329 = vround.ne.pseudo %v328
        %v330 = vmax.f32 %v329, -128.0
        %v331 = vmin.f32 %v330, 127.0
        %v332 = vpack.c.bf16 %v331, %v331
        %v333 = vld [vmem:[%s263] sm:$0xff]
        %v334 = vstv %s314
        %v335 = vmul.f32 %v333, %v334
        %v336 = vround.ne.pseudo %v335
        %v337 = vmax.f32 %v336, -128.0
        %v338 = vmin.f32 %v337, 127.0
        %v339 = vpack.c.bf16 %v338, %v338
        %vm340 = vcmask 261120
        %v342 = vsel %vm340, %v325, 0
        %v345 = vsel %vm340, %v332, 0
        %347 = vmatprep.subr.bf16.mxu0 0
        %348 = vmatpush1.bf16.xpose.msra.mxu0 0
        %349 = vmatprep.subr.bf16.mxu0 0
        %350 = vmatpush1.bf16.xpose.msra.mxu0 0
        %351 = vmatprep.subr.bf16.mxu0 0
        %352 = vmatpush1.bf16.xpose.msra.mxu0 0
        %353 = vmatprep.subr.bf16.mxu0 0
        %354 = vmatpush1.bf16.xpose.msra.mxu0 0
        %355 = vmatprep.subr.bf16.mxu0 0
        %356 = vmatpush1.bf16.xpose.msra.mxu0 0
        %357 = vmatprep.subr.bf16.mxu0 0
        %358 = vmatpush1.bf16.xpose.msra.mxu0 0
        %359 = vmatprep.subr.bf16.mxu0 0
        %360 = vmatpush1.bf16.xpose.msra.mxu0 0
        %361 = vmatprep.subr.bf16.mxu0 0
        %362 = vmatpush1.bf16.xpose.msra.mxu0 %v345
        %363 = vmatprep.subr.bf16.mxu0 0
        %364 = vmatpush2.bf16.xpose.msra.mxu0 0
        %365 = vmatprep.subr.bf16.mxu0 0
        %366 = vmatpush2.bf16.xpose.msra.mxu0 0
        %367 = vmatprep.subr.bf16.mxu0 0
        %368 = vmatpush2.bf16.xpose.msra.mxu0 0
        %369 = vmatprep.subr.bf16.mxu0 0
        %370 = vmatpush2.bf16.xpose.msra.mxu0 0
        %371 = vmatprep.subr.bf16.mxu0 0
        %372 = vmatpush2.bf16.xpose.msra.mxu0 0
        %373 = vmatprep.subr.bf16.mxu0 0
        %374 = vmatpush2.bf16.xpose.msra.mxu0 0
        %375 = vmatprep.subr.bf16.mxu0 0
        %376 = vmatpush2.bf16.xpose.msra.mxu0 0
        %377 = vmatprep.subr.bf16.mxu0 0
        %378 = vmatpush2.bf16.xpose.msra.mxu0 0
        %379 = vmatprep.mubr.bf16.mxu0 0
        %380 = vmatmul.mubr.bf16.gmra.mxu0 %v342
        %v381 = vpop.f32.mrf.mxu0
        %v382 = vadd.f32 0.0, %v381
        %v383 = vpop.f32.mrf.mxu0
        %v384 = vpop.f32.mrf.mxu0
        %v385 = vpop.f32.mrf.mxu0
        %386 = vdwg.mxu0
        %v387 = vstv %s316
        %v388 = vmul.f32 %v382, %v387
        %v389 = vadd.f32 %v388, %v318
        %vm390 = vcmask 64512
        %v391 = vsel %vm390, %v389, -inf
        %392 = vmax.xlane.f32.xlu0 %v391
        %v393 = vpop.xlane.xlu0 %392
        %v394 = vsub.f32 %v389, %v393
        %v395 = vmul.f32 %v394, 1.442695
        %v396 = vpow.pop %v395
        %v397 = vsel %vm390, %v396, 0.0
        %398 = vadd.xlane.f32.xlu0 %v397
        %v399 = vpop.xlane.xlu0 %398
        %v400 = vrcp.pop %v399
        %v401 = vmul.f32 %v396, %v400
        %v402 = vmul.f32 %v401, 256.0
        %v403 = vfloor.f32 %v402
        %v404 = vpack.c.bf16 %v403, %v403
        %v406 = vsel %vm390, %v404, 0
        %vm408 = vcmask 1043456
        %v410 = vsel %vm408, %v339, 0
        %412 = vmatprep.subr.bf16.mxu0 0
        %413 = vmatpush1.bf16.msra.mxu0 0
        %414 = vmatprep.subr.bf16.mxu0 0
        %415 = vmatpush1.bf16.msra.mxu0 0
        %416 = vmatprep.subr.bf16.mxu0 0
        %417 = vmatpush1.bf16.msra.mxu0 0
        %418 = vmatprep.subr.bf16.mxu0 0
        %419 = vmatpush1.bf16.msra.mxu0 0
        %420 = vmatprep.subr.bf16.mxu0 0
        %421 = vmatpush1.bf16.msra.mxu0 0
        %422 = vmatprep.subr.bf16.mxu0 0
        %423 = vmatpush1.bf16.msra.mxu0 0
        %424 = vmatprep.subr.bf16.mxu0 0
        %425 = vmatpush1.bf16.msra.mxu0 0
        %426 = vmatprep.subr.bf16.mxu0 0
        %427 = vmatpush1.bf16.msra.mxu0 %v410
        %428 = vmatprep.subr.bf16.mxu0 0
        %429 = vmatpush2.bf16.msra.mxu0 0
        %430 = vmatprep.subr.bf16.mxu0 0
        %431 = vmatpush2.bf16.msra.mxu0 0
        %432 = vmatprep.subr.bf16.mxu0 0
        %433 = vmatpush2.bf16.msra.mxu0 0
        %434 = vmatprep.subr.bf16.mxu0 0
        %435 = vmatpush2.bf16.msra.mxu0 0
        %436 = vmatprep.subr.bf16.mxu0 0
        %437 = vmatpush2.bf16.msra.mxu0 0
        %438 = vmatprep.subr.bf16.mxu0 0
        %439 = vmatpush2.bf16.msra.mxu0 0
        %440 = vmatprep.subr.bf16.mxu0 0
        %441 = vmatpush2.bf16.msra.mxu0 0
        %442 = vmatprep.subr.bf16.mxu0 0
        %443 = vmatpush2.bf16.msra.mxu0 0
        %444 = vmatprep.mubr.bf16.mxu0 0
        %445 = vmatmul.mubr.bf16.gmra.mxu0 %v406
        %v446 = vpop.f32.mrf.mxu0
        %v447 = vadd.f32 0.0, %v446
        %v448 = vpop.f32.mrf.mxu0
        %v449 = vpop.f32.mrf.mxu0
        %v450 = vpop.f32.mrf.mxu0
        %451 = vdwg.mxu0
        %v452 = vstv %s317
        %v453 = vmul.f32 %v447, %v452
        %454 = vst.msk [vmem:[%s301] sm:$0xff] %vm340, %v453
        %s455 = sand.u32 %s137, 1
        %s456 = scalar_lea.sflag [#allocation6], %s455
        %s457 = sand.u32 %s137, 1
        %s458 = smul.addr %s457, 8
        %s459 = scalar_lea.vmem [#allocation12], %s458
        // Predicated region
        $region53: #{tpu_custom_call.1} parent=35 // pred_check
          %p460 = pneg %p147
        $region54: #{tpu_custom_call.1} parent=35 // pred_check_branch
          %462 = sbr.rel (%p460) target = $region56
        $region55: #{tpu_custom_call.1} parent=35 // pred_region
          %s464 = ssub.s32 128, 128
          %465 = vsyncadd %s456, %s464
          %s466 = smul.addr %s30, 128
          %s467 = scalar_lea.hbm %s5, %s466
          %s469 = sshll.u32 %s459, 4
          %s470 = int_to_ptr.vmem [resolvable:$true] %s469
          %472 = dma.vmem_to_hbm [thread:$0]  %s470, 128, %s467, %s456
        $region56: #{tpu_custom_call.1} parent=35 // pred_fallthru
          _
      $region36: #{tpu_custom_call.1} parent=5 // pred_fallthru
        _
      %p473 = scmp.le.s32.totalorder 2, %s25
      // Predicated region
      $region57: #{tpu_custom_call.1} parent=5 // pred_check
        %p474 = pneg %p473
      $region58: #{tpu_custom_call.1} parent=5 // pred_check_branch
        %476 = sbr.rel (%p474) target = $region60
      $region59: #{tpu_custom_call.1} parent=5 // pred_region
        %s477 = ssub.s32 %s25, 2
        // Predicated region
        $region61: #{tpu_custom_call.1} parent=59 // pred_check
          %p478 = pneg %p153
        $region62: #{tpu_custom_call.1} parent=59 // pred_check_branch
          %480 = sbr.rel (%p478) target = $region64
        $region63: #{tpu_custom_call.1} parent=59 // pred_region
          %s481 = sand.u32 %s138, 1
          %s482 = scalar_lea.sflag [#allocation6], %s481
          %s483 = sand.u32 %s138, 1
          %s484 = smul.addr %s483, 8
          %s485 = scalar_lea.vmem [#allocation12], %s484
          %486 = dma.done %s482, 128
        $region64: #{tpu_custom_call.1} parent=59 // pred_fallthru
          _
      $region60: #{tpu_custom_call.1} parent=5 // pred_fallthru
        _
    $region6: #{tpu_custom_call.1} parent=1 // loop_footer
      %s29 = sadd.s32 1, %s25
    $region7: #{tpu_custom_call.1} parent=1 // loop_footer_branch
      %24 = sbr.rel target = $region3
    $region8: #{tpu_custom_call.1} parent=1 // loop_exit
      _
    %487 = vsyncpa [#allocation5], 1
    %s488 = scalar_lea.sflag [#allocation5], 1
    %489 = vsyncpa %s488, 1
    %490 = vsyncpa [#allocation8], 1
    %s491 = scalar_lea.sflag [#allocation8], 1
    %492 = vsyncpa %s491, 1
    %493 = vsyncpa [#allocation11], 1
    %494 = vsyncpa [#allocation6], 1
    %s495 = scalar_lea.sflag [#allocation6], 1
    %496 = vsyncpa %s495, 1

</llo_original>
